<compile_context>
chip_gen: v5e
topology: v5e:2x2
jax: 0.10.0
libtpu: 0.0.40
codegen_flags: <defaults>
</compile_context>

<pallas_src>
import jax
import jax.numpy as jnp
from jax.experimental import pallas as pl
from jax.experimental.pallas import tpu as pltpu

BN_EPS = 1e-5
_MIB = 1024 * 1024


# ----------------------------- small helpers --------------------------------
def _round_up(x, m):
    return (x + m - 1) // m * m


def _device_kind():
    try:
        return jax.devices()[0].device_kind.lower()
    except Exception:
        return ""


def _vmem_capacity_bytes():
    """Physical VMEM per TensorCore, with conservative fallbacks."""
    try:
        info = pltpu.get_tpu_info()
        cap = getattr(info, "vmem_capacity_bytes", None)
        if cap:
            return int(cap)
    except Exception:
        pass
    kind = _device_kind()
    if "v7" in kind:
        return 64 * _MIB
    if "v5" in kind or "v6" in kind or "trillium" in kind:
        return 128 * _MIB
    return 64 * _MIB  # conservative default for unknown generations


def _mxu_dim():
    kind = _device_kind()
    if "v6" in kind or "v7" in kind or "trillium" in kind:
        return 256
    return 128


def _num_tensorcores():
    # v7x has 2 TensorCores per chip; earlier generations have 1.
    return 2 if "v7" in _device_kind() else 1


def _pad_dim(d, mxu):
    base = 256 if (mxu >= 256 and d >= 256) else 128
    return _round_up(d, base)


# ------------------------------- kernels ------------------------------------
def _mlp_resident_kernel(c_ref, w1_ref, b1_ref, w2_ref, b2_ref, o_ref):
    # Dropout layers are identity in eval mode.
    # TODO(synk): training-mode dropout (pltpu.prng_random_bits mask) not implemented.
    h = jnp.dot(c_ref[...], w1_ref[...], preferred_element_type=jnp.float32)
    h = jnp.maximum(h + b1_ref[...], 0.0)          # bias + ReLU in f32 (v5e-safe)
    # BatchNorm1d (eval) already folded into w2/b2 in the wrapper.
    out = jnp.dot(h.astype(w2_ref.dtype), w2_ref[...],
                  preferred_element_type=jnp.float32) + b2_ref[...]
    o_ref[...] = out.astype(o_ref.dtype)


def _mlp_hidden_tiled_kernel(c_ref, w1_ref, b1_ref, w2_ref, b2_ref, o_ref, acc_ref):
    # Fallback path: hidden dim tiled, fc2 accumulated over hidden blocks in f32.
    k = pl.program_id(1)

    @pl.when(k == 0)
    def _():
        acc_ref[...] = jnp.zeros_like(acc_ref)

    h = jnp.dot(c_ref[...], w1_ref[...], preferred_element_type=jnp.float32)
    h = jnp.maximum(h + b1_ref[...], 0.0)
    acc_ref[...] += jnp.dot(h.astype(w2_ref.dtype), w2_ref[...],
                            preferred_element_type=jnp.float32)

    @pl.when(k == pl.num_programs(1) - 1)
    def _():
        o_ref[...] = (acc_ref[...] + b2_ref[...]).astype(o_ref.dtype)


# ------------------------------- wrapper -------------------------------------
def mlp_forward(c, y, z, params, *, compute_dtype=jnp.bfloat16, out_dtype=None,
                tile_b_max=512, tile_h_max=None, use_pallas=None,
                force_hidden_tiling=False):
    """Fused MLP forward. `y`/`z` are accepted but unused (as in the PyTorch module)."""
    del y, z
    w1, b1, gamma, beta, run_mean, run_var, w2, b2 = params
    batch, dim_in = c.shape
    dim_hidden = w1.shape[1]
    dim_out = w2.shape[1]
    out_dtype = jnp.dtype(jnp.float32) if out_dtype is None else jnp.dtype(out_dtype)

    # ---- Fold eval-mode BatchNorm1d (applied after ReLU) into fc2 (exact, f32) ----
    scale = gamma * jax.lax.rsqrt(run_var + BN_EPS)           # (1, H)
    shift = beta - run_mean * scale                           # (1, H)
    w2_fold = w2 * scale.reshape(dim_hidden, 1)               # (H, O)
    b2_fold = shift @ w2 + b2                                 # (1, O)

    # ---- Small-shape bypass: padding to 128/256 lanes would make >90% of the MXU
    #      work multiply-by-zero, so a Pallas launch is pure overhead here.
    small = batch * dim_hidden * (dim_in + dim_out) < (1 << 22)
    if use_pallas is None:
        use_pallas = not small
    if not use_pallas:
        h = jnp.maximum(c @ w1 + b1, 0.0)
        return (h @ w2_fold + b2_fold).astype(out_dtype)

    # ---- Padded feature dims (lane-dense stores, full MXU tiles) ----
    mxu = _mxu_dim()
    din_p = _pad_dim(dim_in, mxu)
    dh_p = _pad_dim(dim_hidden, mxu)
    dout_p = _pad_dim(dim_out, mxu)

    cd = jnp.dtype(compute_dtype).itemsize
    ob = out_dtype.itemsize

    capacity = _vmem_capacity_bytes()
    budget = int(capacity * 0.8)          # ~51 MiB on v7x, ~102 MiB on v5e/v6e

    # Per-batch-row working set: double-buffered streamed tiles + in-kernel temps.
    per_row = (2 * din_p * cd             # activation tile (double-buffered)
               + 2 * dout_p * ob          # output tile (double-buffered)
               + dh_p * (4 + cd)          # h in f32 + compute-dtype copy for 2nd dot
               + dout_p * 4)              # f32 dot result before the store cast
    weight_bytes = (din_p * dh_p + dh_p * dout_p) * cd + (dh_p + dout_p) * 4

    resident_ok = (not force_hidden_tiling) and (weight_bytes + 8 * per_row <= budget)

    flops = 2 * batch * (din_p * dh_p + dh_p * dout_p)

    # =================== path 1: weights fully resident in VMEM ===================
    if resident_ok:
        avail = budget - weight_bytes
        tile_cap = max(8, (avail // per_row) // 8 * 8)
        tile_b = int(min(tile_b_max, tile_cap, _round_up(batch, 8)))
        # Guarantee >=2 grid steps so v7x's two TensorCores both get work.
        if _num_tensorcores() > 1 and batch > 8:
            tile_b = min(tile_b, max(8, _round_up((batch + 1) // 2, 8)))
        tile_b = max(8, (tile_b // 8) * 8)
        batch_p = _round_up(batch, tile_b)

        # Streamed activations already in compute dtype (halves DMA + VMEM footprint).
        c_p = jnp.pad(c.astype(compute_dtype),
                      ((0, batch_p - batch), (0, din_p - dim_in)))
        w1_p = jnp.pad(w1, ((0, din_p - dim_in), (0, dh_p - dim_hidden))).astype(compute_dtype)
        b1_p = jnp.pad(b1, ((0, 0), (0, dh_p - dim_hidden))).astype(jnp.float32)
        w2_p = jnp.pad(w2_fold, ((0, dh_p - dim_hidden), (0, dout_p - dim_out))).astype(compute_dtype)
        b2_p = jnp.pad(b2_fold, ((0, 0), (0, dout_p - dim_out))).astype(jnp.float32)

        grid = (batch_p // tile_b,)
        bytes_accessed = (c_p.size * cd + w1_p.size * cd + w2_p.size * cd
                          + b1_p.size * 4 + b2_p.size * 4 + batch_p * dout_p * ob)

        def _call(single_buffer):
            def res_spec(shape):
                if single_buffer and hasattr(pl, "Buffered"):
                    return pl.BlockSpec(shape, lambda i: (0, 0),
                                        pipeline_mode=pl.Buffered(1))
                return pl.BlockSpec(shape, lambda i: (0, 0))

            need = weight_bytes * (1 if single_buffer else 2) + tile_b * per_row
            vmem_limit = int(min(capacity * 0.92, max(16 * _MIB, need + 8 * _MIB)))
            return pl.pallas_call(
                _mlp_resident_kernel,
                out_shape=jax.ShapeDtypeStruct((batch_p, dout_p), out_dtype),
                grid=grid,
                in_specs=[
                    pl.BlockSpec((tile_b, din_p), lambda i: (i, 0)),   # batch-tiled
                    res_spec((din_p, dh_p)),                           # w1 resident
                    res_spec((1, dh_p)),                               # b1 resident
                    res_spec((dh_p, dout_p)),                          # w2 (BN-folded)
                    res_spec((1, dout_p)),                             # b2 (BN-folded)
                ],
                out_specs=pl.BlockSpec((tile_b, dout_p), lambda i: (i, 0)),
                compiler_params=pltpu.CompilerParams(
                    dimension_semantics=("parallel",),
                    vmem_limit_bytes=vmem_limit),
                cost_estimate=pl.CostEstimate(
                    flops=flops, transcendentals=0, bytes_accessed=bytes_accessed),
            )(c_p, w1_p, b1_p, w2_p, b2_p)

        try:
            out_p = _call(single_buffer=True)
        except Exception:
            # Fallback for environments where pl.Buffered(1) is unavailable/rejected.
            out_p = _call(single_buffer=False)
        return out_p[:batch, :dim_out]

    # ============ path 2: hidden-dim tiled (weights too large for VMEM) ============
    # TODO(synk): very large dim_in / dim_out would additionally need K/N tiling of
    #             fc1's input dim and the output dim; only the hidden dim is tiled here.
    tile_b = int(min(tile_b_max, 256, _round_up(batch, 8)))
    if _num_tensorcores() > 1 and batch > 8:
        tile_b = min(tile_b, max(8, _round_up((batch + 1) // 2, 8)))
    tile_b = max(8, (tile_b // 8) * 8)
    batch_p = _round_up(batch, tile_b)

    lane = 256 if (mxu >= 256 and dh_p % 256 == 0) else 128
    # bytes that scale with tile_h (double-buffered w1/b1/w2 slabs + in-kernel h temps)
    per_h = 2 * (din_p + dout_p) * cd + 2 * 4 + tile_b * (4 + cd)
    fixed = (2 * dout_p * 4                       # b2 (conservative x2)
             + 2 * tile_b * din_p * cd            # activation tile (double-buffered)
             + 2 * tile_b * dout_p * ob           # output tile (double-buffered)
             + tile_b * dout_p * 4                # f32 accumulator scratch
             + tile_b * dout_p * 4)               # f32 dot result temp
    tile_h = lane
    t = dh_p if tile_h_max is None else min(dh_p, _round_up(tile_h_max, lane))
    while t >= lane:
        if dh_p % t == 0 and fixed + t * per_h <= budget:
            tile_h = t
            break
        t -= lane
    n_h = dh_p // tile_h

    c_p = jnp.pad(c.astype(compute_dtype),
                  ((0, batch_p - batch), (0, din_p - dim_in)))
    w1_p = jnp.pad(w1, ((0, din_p - dim_in), (0, dh_p - dim_hidden))).astype(compute_dtype)
    b1_p = jnp.pad(b1, ((0, 0), (0, dh_p - dim_hidden))).astype(jnp.float32)
    w2_p = jnp.pad(w2_fold, ((0, dh_p - dim_hidden), (0, dout_p - dim_out))).astype(compute_dtype)
    b2_p = jnp.pad(b2_fold, ((0, 0), (0, dout_p - dim_out))).astype(jnp.float32)

    bytes_accessed = (n_h * c_p.size * cd + w1_p.size * cd + w2_p.size * cd
                      + b1_p.size * 4 + b2_p.size * 4 + batch_p * dout_p * ob)

    def _call(single_buffer):
        if single_buffer and hasattr(pl, "Buffered"):
            b2_spec = pl.BlockSpec((1, dout_p), lambda i, k: (0, 0),
                                   pipeline_mode=pl.Buffered(1))
        else:
            b2_spec = pl.BlockSpec((1, dout_p), lambda i, k: (0, 0))
        vmem_limit = int(min(capacity * 0.92,
                             max(16 * _MIB, fixed + tile_h * per_h + 8 * _MIB)))
        return pl.pallas_call(
            _mlp_hidden_tiled_kernel,
            out_shape=jax.ShapeDtypeStruct((batch_p, dout_p), out_dtype),
            grid=(batch_p // tile_b, n_h),
            in_specs=[
                pl.BlockSpec((tile_b, din_p), lambda i, k: (i, 0)),
                pl.BlockSpec((din_p, tile_h), lambda i, k: (0, k)),
                pl.BlockSpec((1, tile_h), lambda i, k: (0, k)),
                pl.BlockSpec((tile_h, dout_p), lambda i, k: (k, 0)),
                b2_spec,
            ],
            out_specs=pl.BlockSpec((tile_b, dout_p), lambda i, k: (i, 0)),
            scratch_shapes=[pltpu.VMEM((tile_b, dout_p), jnp.float32)],
            compiler_params=pltpu.CompilerParams(
                dimension_semantics=("parallel", "arbitrary"),
                vmem_limit_bytes=vmem_limit),
            cost_estimate=pl.CostEstimate(
                flops=flops, transcendentals=0, bytes_accessed=bytes_accessed),
        )(c_p, w1_p, b1_p, w2_p, b2_p)

    try:
        out_p = _call(single_buffer=True)
    except Exception:
        out_p = _call(single_buffer=False)
    return out_p[:batch, :dim_out]


# ----------------------------- params / reference ----------------------------
def init_params(key, dim_in, dim_hidden, dim_out):
    k1, k2, k3, k4, k5, k6, k7, k8 = jax.random.split(key, 8)
    # Linear weights stored as (in, out), i.e. transposed vs. PyTorch's (out, in).
    w1 = jax.random.normal(k1, (dim_in, dim_hidden), jnp.float32) * 0.05
    b1 = jax.random.normal(k2, (1, dim_hidden), jnp.float32) * 0.05
    w2 = jax.random.normal(k3, (dim_hidden, dim_out), jnp.float32) * 0.05
    b2 = jax.random.normal(k4, (1, dim_out), jnp.float32) * 0.05
    # Non-trivial BatchNorm1d parameters / running stats (eval mode).
    gamma = 1.0 + 0.1 * jax.random.normal(k5, (1, dim_hidden), jnp.float32)
    beta = 0.1 * jax.random.normal(k6, (1, dim_hidden), jnp.float32)
    run_mean = 0.1 * jax.random.normal(k7, (1, dim_hidden), jnp.float32)
    run_var = jnp.abs(jax.random.normal(k8, (1, dim_hidden), jnp.float32)) + 0.5
    return (w1, b1, gamma, beta, run_mean, run_var, w2, b2)


def mlp_reference(c, params):
    """Plain-JAX reference (un-folded BN, f32, highest matmul precision)."""
    w1, b1, gamma, beta, run_mean, run_var, w2, b2 = params
    hp = jax.lax.Precision.HIGHEST
    h = jnp.dot(c, w1, precision=hp) + b1
    h = jnp.maximum(h, 0.0)
    h = (h - run_mean) * jax.lax.rsqrt(run_var + BN_EPS) * gamma + beta
    return jnp.dot(h, w2, precision=hp) + b2


# ---------------------------------- main --------------------------------------
if __name__ == "__main__":
    key = jax.random.PRNGKey(0)
    kc, ky, kz, kp = jax.random.split(key, 4)

    batch, dim_in, dim_hidden, dim_out = 16, 32, 64, 16
    c = jax.random.normal(kc, (batch, dim_in), jnp.float32)
    y = jax.random.normal(ky, (batch,), jnp.float32)   # unused by forward
    z = jax.random.normal(kz, (batch,), jnp.float32)   # unused by forward

    params = init_params(kp, dim_in, dim_hidden, dim_out)
    ref = mlp_reference(c, params)

    # 1) Resident-weight Pallas kernel (forced), bf16 MXU operands / f32 accumulation.
    out = jax.block_until_ready(mlp_forward(c, y, z, params, use_pallas=True))
    assert out.shape == (batch, dim_out)
    assert jnp.allclose(out, ref, atol=3e-2, rtol=3e-2), float(jnp.max(jnp.abs(out - ref)))

    # 2) Same kernel with f32 compute — tight match against the reference.
    out_f32 = jax.block_until_ready(
        mlp_forward(c, y, z, params, use_pallas=True, compute_dtype=jnp.float32))
    assert jnp.allclose(out_f32, ref, atol=2e-3, rtol=2e-3), \
        float(jnp.max(jnp.abs(out_f32 - ref)))

    # 3) Hidden-tiled fallback kernel (forced, >=2 reduction steps over the hidden dim).
    params_big = init_params(kp, dim_in, 512, dim_out)
    ref_big = mlp_reference(c, params_big)
    out_big = jax.block_until_ready(
        mlp_forward(c, y, z, params_big, use_pallas=True, force_hidden_tiling=True,
                    tile_h_max=256, compute_dtype=jnp.float32))
    assert jnp.allclose(out_big, ref_big, atol=2e-3, rtol=2e-3), \
        float(jnp.max(jnp.abs(out_big - ref_big)))

    # 4) Auto path: shapes this small take the XLA bypass — same numbers.
    out_auto = jax.block_until_ready(mlp_forward(c, y, z, params))
    assert jnp.allclose(out_auto, ref, atol=2e-3, rtol=2e-3)

    print("KERNEL_OK")
</pallas_src>

<mosaic_0001>
module attributes {stable_mosaic.version = 11 : i64} {
  func.func @_mlp_resident_kernel(%arg0: i32, %arg1: memref<16x128xbf16, #tpu.memory_space<vmem>>, %arg2: memref<128x128xbf16, #tpu.memory_space<vmem>>, %arg3: memref<1x128xf32, #tpu.memory_space<vmem>>, %arg4: memref<128x128xbf16, #tpu.memory_space<vmem>>, %arg5: memref<1x128xf32, #tpu.memory_space<vmem>>, %arg6: memref<16x128xf32, #tpu.memory_space<vmem>>) attributes {dimension_semantics = [#tpu.dimension_semantics<parallel>], iteration_bounds = array<i64: 1>, scalar_prefetch = 0 : i64, scratch_operands = 0 : i64, tpu.core_type = #tpu.core_type<tc>, window_params = [{transform_indices = @transform_0, window_bounds = array<i64: 16, 128>}, {pipeline_mode = #tpu.pipeline_mode<synchronous>, transform_indices = @transform_1, window_bounds = array<i64: 128, 128>}, {pipeline_mode = #tpu.pipeline_mode<synchronous>, transform_indices = @transform_2, window_bounds = array<i64: 1, 128>}, {pipeline_mode = #tpu.pipeline_mode<synchronous>, transform_indices = @transform_3, window_bounds = array<i64: 128, 128>}, {pipeline_mode = #tpu.pipeline_mode<synchronous>, transform_indices = @transform_4, window_bounds = array<i64: 1, 128>}, {transform_indices = @transform_5, window_bounds = array<i64: 16, 128>}]} {
    %c0 = arith.constant 0 : index
    %c0_0 = arith.constant 0 : index
    %0 = vector.load %arg1[%c0, %c0_0] : memref<16x128xbf16, #tpu.memory_space<vmem>>, vector<16x128xbf16>
    %c0_1 = arith.constant 0 : index
    %c0_2 = arith.constant 0 : index
    %1 = vector.load %arg2[%c0_1, %c0_2] : memref<128x128xbf16, #tpu.memory_space<vmem>>, vector<128x128xbf16>
    %cst = arith.constant dense<0.000000e+00> : vector<16x128xf32>
    %2 = tpu.matmul %0, %1, %cst {dimension_numbers = #tpu.dot_dimension_numbers<[1], [0], [0], [1], [0, 0, 1, 1], [], []>} : vector<16x128xbf16>, vector<128x128xbf16>, vector<16x128xf32> -> vector<16x128xf32>
    %c0_3 = arith.constant 0 : index
    %c0_4 = arith.constant 0 : index
    %3 = vector.load %arg3[%c0_3, %c0_4] : memref<1x128xf32, #tpu.memory_space<vmem>>, vector<1x128xf32>
    %4 = vector.broadcast %3 : vector<1x128xf32> to vector<16x128xf32>
    %5 = arith.addf %2, %4 : vector<16x128xf32>
    %cst_5 = arith.constant 0.000000e+00 : f32
    %6 = vector.broadcast %cst_5 : f32 to vector<16x128xf32>
    %7 = arith.maximumf %5, %6 : vector<16x128xf32>
    %8 = arith.truncf %7 : vector<16x128xf32> to vector<16x128xbf16>
    %c0_6 = arith.constant 0 : index
    %c0_7 = arith.constant 0 : index
    %9 = vector.load %arg4[%c0_6, %c0_7] : memref<128x128xbf16, #tpu.memory_space<vmem>>, vector<128x128xbf16>
    %cst_8 = arith.constant dense<0.000000e+00> : vector<16x128xf32>
    %10 = tpu.matmul %8, %9, %cst_8 {dimension_numbers = #tpu.dot_dimension_numbers<[1], [0], [0], [1], [0, 0, 1, 1], [], []>} : vector<16x128xbf16>, vector<128x128xbf16>, vector<16x128xf32> -> vector<16x128xf32>
    %c0_9 = arith.constant 0 : index
    %c0_10 = arith.constant 0 : index
    %11 = vector.load %arg5[%c0_9, %c0_10] : memref<1x128xf32, #tpu.memory_space<vmem>>, vector<1x128xf32>
    %12 = vector.broadcast %11 : vector<1x128xf32> to vector<16x128xf32>
    %13 = arith.addf %10, %12 : vector<16x128xf32>
    %c0_11 = arith.constant 0 : index
    %c0_12 = arith.constant 0 : index
    %14 = vector.load %arg6[%c0_11, %c0_12] : memref<16x128xf32, #tpu.memory_space<vmem>>, vector<16x128xf32>
    tpu.vector_store %arg6[%c0_11, %c0_12], %13 {strides = array<i32>} : memref<16x128xf32, #tpu.memory_space<vmem>>, vector<16x128xf32>,
    return
  }
  func.func @transform_0(%arg0: i32) -> (i32, i32) {
    %c0_i32 = arith.constant 0 : i32
    %c0_i32_0 = arith.constant 0 : i32
    return %arg0, %c0_i32 : i32, i32
  }
  func.func @transform_1(%arg0: i32) -> (i32, i32) {
    %c0_i32 = arith.constant 0 : i32
    %c0_i32_0 = arith.constant 0 : i32
    %c0_i32_1 = arith.constant 0 : i32
    return %c0_i32, %c0_i32_0 : i32, i32
  }
  func.func @transform_2(%arg0: i32) -> (i32, i32) {
    %c0_i32 = arith.constant 0 : i32
    %c0_i32_0 = arith.constant 0 : i32
    %c0_i32_1 = arith.constant 0 : i32
    return %c0_i32, %c0_i32_0 : i32, i32
  }
  func.func @transform_3(%arg0: i32) -> (i32, i32) {
    %c0_i32 = arith.constant 0 : i32
    %c0_i32_0 = arith.constant 0 : i32
    %c0_i32_1 = arith.constant 0 : i32
    return %c0_i32, %c0_i32_0 : i32, i32
  }
  func.func @transform_4(%arg0: i32) -> (i32, i32) {
    %c0_i32 = arith.constant 0 : i32
    %c0_i32_0 = arith.constant 0 : i32
    %c0_i32_1 = arith.constant 0 : i32
    return %c0_i32, %c0_i32_0 : i32, i32
  }
  func.func @transform_5(%arg0: i32) -> (i32, i32) {
    %c0_i32 = arith.constant 0 : i32
    %c0_i32_0 = arith.constant 0 : i32
    return %arg0, %c0_i32 : i32, i32
  }
}

module attributes {stable_mosaic.version = 11 : i64} {
  func.func @_mlp_resident_kernel(%arg0: i32, %arg1: memref<16x128xbf16, #tpu.memory_space<vmem>>, %arg2: memref<128x128xbf16, #tpu.memory_space<vmem>>, %arg3: memref<1x128xf32, #tpu.memory_space<vmem>>, %arg4: memref<128x128xbf16, #tpu.memory_space<vmem>>, %arg5: memref<1x128xf32, #tpu.memory_space<vmem>>, %arg6: memref<16x128xf32, #tpu.memory_space<vmem>>) attributes {dimension_semantics = [#tpu.dimension_semantics<parallel>], iteration_bounds = array<i64: 1>, scalar_prefetch = 0 : i64, scratch_operands = 0 : i64, tpu.core_type = #tpu.core_type<tc>, window_params = [{transform_indices = @transform_0, window_bounds = array<i64: 16, 128>}, {pipeline_mode = #tpu.pipeline_mode<synchronous>, transform_indices = @transform_1, window_bounds = array<i64: 128, 128>}, {pipeline_mode = #tpu.pipeline_mode<synchronous>, transform_indices = @transform_2, window_bounds = array<i64: 1, 128>}, {pipeline_mode = #tpu.pipeline_mode<synchronous>, transform_indices = @transform_3, window_bounds = array<i64: 128, 128>}, {pipeline_mode = #tpu.pipeline_mode<synchronous>, transform_indices = @transform_4, window_bounds = array<i64: 1, 128>}, {transform_indices = @transform_5, window_bounds = array<i64: 16, 128>}]} {
    %c0 = arith.constant 0 : index
    %c0_0 = arith.constant 0 : index
    %0 = vector.load %arg1[%c0, %c0_0] : memref<16x128xbf16, #tpu.memory_space<vmem>>, vector<16x128xbf16>
    %c0_1 = arith.constant 0 : index
    %c0_2 = arith.constant 0 : index
    %1 = vector.load %arg2[%c0_1, %c0_2] : memref<128x128xbf16, #tpu.memory_space<vmem>>, vector<128x128xbf16>
    %cst = arith.constant dense<0.000000e+00> : vector<16x128xf32>
    %2 = tpu.matmul %0, %1, %cst {dimension_numbers = #tpu.dot_dimension_numbers<[1], [0], [0], [1], [0, 0, 1, 1], [], []>} : vector<16x128xbf16>, vector<128x128xbf16>, vector<16x128xf32> -> vector<16x128xf32>
    %c0_3 = arith.constant 0 : index
    %c0_4 = arith.constant 0 : index
    %3 = vector.load %arg3[%c0_3, %c0_4] : memref<1x128xf32, #tpu.memory_space<vmem>>, vector<1x128xf32>
    %4 = vector.broadcast %3 : vector<1x128xf32> to vector<16x128xf32>
    %5 = arith.addf %2, %4 : vector<16x128xf32>
    %cst_5 = arith.constant 0.000000e+00 : f32
    %6 = vector.broadcast %cst_5 : f32 to vector<16x128xf32>
    %7 = arith.maximumf %5, %6 : vector<16x128xf32>
    %8 = arith.truncf %7 : vector<16x128xf32> to vector<16x128xbf16>
    %c0_6 = arith.constant 0 : index
    %c0_7 = arith.constant 0 : index
    %9 = vector.load %arg4[%c0_6, %c0_7] : memref<128x128xbf16, #tpu.memory_space<vmem>>, vector<128x128xbf16>
    %cst_8 = arith.constant dense<0.000000e+00> : vector<16x128xf32>
    %10 = tpu.matmul %8, %9, %cst_8 {dimension_numbers = #tpu.dot_dimension_numbers<[1], [0], [0], [1], [0, 0, 1, 1], [], []>} : vector<16x128xbf16>, vector<128x128xbf16>, vector<16x128xf32> -> vector<16x128xf32>
    %c0_9 = arith.constant 0 : index
    %c0_10 = arith.constant 0 : index
    %11 = vector.load %arg5[%c0_9, %c0_10] : memref<1x128xf32, #tpu.memory_space<vmem>>, vector<1x128xf32>
    %12 = vector.broadcast %11 : vector<1x128xf32> to vector<16x128xf32>
    %13 = arith.addf %10, %12 : vector<16x128xf32>
    %c0_11 = arith.constant 0 : index
    %c0_12 = arith.constant 0 : index
    %14 = vector.load %arg6[%c0_11, %c0_12] : memref<16x128xf32, #tpu.memory_space<vmem>>, vector<16x128xf32>
    tpu.vector_store %arg6[%c0_11, %c0_12], %13 {strides = array<i32>} : memref<16x128xf32, #tpu.memory_space<vmem>>, vector<16x128xf32>,
    return
  }
  func.func @transform_0(%arg0: i32) -> (i32, i32) {
    %c0_i32 = arith.constant 0 : i32
    %c0_i32_0 = arith.constant 0 : i32
    return %arg0, %c0_i32 : i32, i32
  }
  func.func @transform_1(%arg0: i32) -> (i32, i32) {
    %c0_i32 = arith.constant 0 : i32
    %c0_i32_0 = arith.constant 0 : i32
    %c0_i32_1 = arith.constant 0 : i32
    return %c0_i32, %c0_i32_0 : i32, i32
  }
  func.func @transform_2(%arg0: i32) -> (i32, i32) {
    %c0_i32 = arith.constant 0 : i32
    %c0_i32_0 = arith.constant 0 : i32
    %c0_i32_1 = arith.constant 0 : i32
    return %c0_i32, %c0_i32_0 : i32, i32
  }
  func.func @transform_3(%arg0: i32) -> (i32, i32) {
    %c0_i32 = arith.constant 0 : i32
    %c0_i32_0 = arith.constant 0 : i32
    %c0_i32_1 = arith.constant 0 : i32
    return %c0_i32, %c0_i32_0 : i32, i32
  }
  func.func @transform_4(%arg0: i32) -> (i32, i32) {
    %c0_i32 = arith.constant 0 : i32
    %c0_i32_0 = arith.constant 0 : i32
    %c0_i32_1 = arith.constant 0 : i32
    return %c0_i32, %c0_i32_0 : i32, i32
  }
  func.func @transform_5(%arg0: i32) -> (i32, i32) {
    %c0_i32 = arith.constant 0 : i32
    %c0_i32_0 = arith.constant 0 : i32
    return %arg0, %c0_i32 : i32, i32
  }
}

</mosaic_0001>

<llo_original>
// kernel: tpu_custom_call.1
$region0: #{tpu_custom_call.1}
  #allocation0 [shape = 'u32[]', space=smem, size = 0x4, offset = 0x4, fixed_abs, tag = 'smem constant byte address 0x4 - core index']
  #allocation1 [shape = 'u32[72,128]{1,0:T(1,128)}', space=vmem, size = 0x9000, scoped, tag = 'internal scratch']
  %s0 = inlined_call_operand.hbm [shape: bf16[16,128], index: 0, kind: input, shape index: {}]
  %s1 = inlined_call_operand.hbm [shape: bf16[128,128], index: 1, kind: input, shape index: {}]
  %s2 = inlined_call_operand.vmem [shape: f32[1,128], index: 2, kind: input, shape index: {}]
  %s3 = inlined_call_operand.hbm [shape: bf16[128,128], index: 3, kind: input, shape index: {}]
  %s4 = inlined_call_operand.vmem [shape: f32[1,128], index: 4, kind: input, shape index: {}]
  %s5 = inlined_call_operand.hbm [shape: f32[16,128], index: 5, kind: output, shape index: {}]
  %s6 = sld [smem:[#allocation0]]
  $region42: #{tpu_custom_call.1} parent=0
    _
  %s8 = ssub.s32 1, %s6
  %s9 = scalar_select 0, %s8, %s6
  $region1: #{tpu_custom_call.1} parent=0
    #allocation2 [shape = 'u8[4096]{0}', space=vmem, size = 0x1000, scoped, tag = 'input window, operand 0, single buffered']
    #allocation3 [shape = 's32[1]{0}', space=sflag, size = 0x4, scoped, tag = 'scoped memory for tpu_custom_call.1']
    #allocation4 [shape = 's32[1]{0}', space=sflag, size = 0x4, scoped, tag = 'scoped memory for tpu_custom_call.1']
    #allocation5 [shape = 'u8[32768]{0}', space=vmem, size = 0x8000, scoped, tag = 'input window, operand 1, single buffered']
    #allocation6 [shape = 's32[1]{0}', space=sflag, size = 0x4, scoped, tag = 'scoped memory for tpu_custom_call.1']
    #allocation7 [shape = 'u8[32768]{0}', space=vmem, size = 0x8000, scoped, tag = 'input window, operand 3, single buffered']
    #allocation8 [shape = 'u8[8192]{0}', space=vmem, size = 0x2000, scoped, tag = 'output window, operand 0, single buffered']
    %10 = vsyncpa [#allocation3], 0
    %11 = vsyncpa [#allocation6], 0
    %12 = vsyncpa [#allocation4], 0
    // Predicated region
    $region2: #{tpu_custom_call.1} parent=1 // pred_check
      _
    $region3: #{tpu_custom_call.1} parent=1 // pred_check_branch
      %14 = sbr.rel (0) target = $region5
    $region4: #{tpu_custom_call.1} parent=1 // pred_region
      %16 = vsyncadd [#allocation3], 0
      %s17 = sshll.u32 %s0, 4
      %s18 = int_to_ptr.hbm [resolvable:$true] %s17
      %s19 = sshll.u32 [#allocation2], 4
      %s20 = int_to_ptr.vmem [resolvable:$true] %s19
      %25 = dma.hbm_to_vmem [thread:$0]  %s18, 128, %s20, [#allocation3], 64, 64, 4
    $region5: #{tpu_custom_call.1} parent=1 // pred_fallthru
      _
    // Predicated region
    $region6: #{tpu_custom_call.1} parent=1 // pred_check
      _
    $region7: #{tpu_custom_call.1} parent=1 // pred_check_branch
      %27 = sbr.rel (0) target = $region9
    $region8: #{tpu_custom_call.1} parent=1 // pred_region
      %29 = vsyncadd [#allocation6], 0
      %s30 = sshll.u32 %s1, 4
      %s31 = int_to_ptr.hbm [resolvable:$true] %s30
      %s32 = sshll.u32 [#allocation5], 4
      %s33 = int_to_ptr.vmem [resolvable:$true] %s32
      %38 = dma.hbm_to_vmem [thread:$0]  %s31, 1024, %s33, [#allocation6], 64, 64, 4
    $region9: #{tpu_custom_call.1} parent=1 // pred_fallthru
      _
    // Predicated region
    $region10: #{tpu_custom_call.1} parent=1 // pred_check
      _
    $region11: #{tpu_custom_call.1} parent=1 // pred_check_branch
      %40 = sbr.rel (0) target = $region13
    $region12: #{tpu_custom_call.1} parent=1 // pred_region
      _
    $region13: #{tpu_custom_call.1} parent=1 // pred_fallthru
      _
    // Predicated region
    $region14: #{tpu_custom_call.1} parent=1 // pred_check
      _
    $region15: #{tpu_custom_call.1} parent=1 // pred_check_branch
      %42 = sbr.rel (0) target = $region17
    $region16: #{tpu_custom_call.1} parent=1 // pred_region
      %44 = vsyncadd [#allocation6], 0
      %s45 = sshll.u32 %s3, 4
      %s46 = int_to_ptr.hbm [resolvable:$true] %s45
      %s47 = sshll.u32 [#allocation7], 4
      %s48 = int_to_ptr.vmem [resolvable:$true] %s47
      %53 = dma.hbm_to_vmem [thread:$0]  %s46, 1024, %s48, [#allocation6], 64, 64, 4
    $region17: #{tpu_custom_call.1} parent=1 // pred_fallthru
      _
    // Predicated region
    $region18: #{tpu_custom_call.1} parent=1 // pred_check
      _
    $region19: #{tpu_custom_call.1} parent=1 // pred_check_branch
      %55 = sbr.rel (0) target = $region21
    $region20: #{tpu_custom_call.1} parent=1 // pred_region
      _
    $region21: #{tpu_custom_call.1} parent=1 // pred_fallthru
      _
    // Predicated region
    $region22: #{tpu_custom_call.1} parent=1 // pred_check
      _
    $region23: #{tpu_custom_call.1} parent=1 // pred_check_branch
      %57 = sbr.rel (0) target = $region25
    $region24: #{tpu_custom_call.1} parent=1 // pred_region
      %59 = dma.done [#allocation3], 128
    $region25: #{tpu_custom_call.1} parent=1 // pred_fallthru
      _
    // Predicated region
    $region26: #{tpu_custom_call.1} parent=1 // pred_check
      _
    $region27: #{tpu_custom_call.1} parent=1 // pred_check_branch
      %61 = sbr.rel (0) target = $region29
    $region28: #{tpu_custom_call.1} parent=1 // pred_region
      %63 = dma.done [#allocation6], 1024
    $region29: #{tpu_custom_call.1} parent=1 // pred_fallthru
      _
    // Predicated region
    $region30: #{tpu_custom_call.1} parent=1 // pred_check
      _
    $region31: #{tpu_custom_call.1} parent=1 // pred_check_branch
      %65 = sbr.rel (0) target = $region33
    $region32: #{tpu_custom_call.1} parent=1 // pred_region
      %67 = dma.done [#allocation6], 1024
    $region33: #{tpu_custom_call.1} parent=1 // pred_fallthru
      _
    %v68 = vld [vmem:[#allocation2] sm:$0xf]
    %v69 = vld [vmem:[#allocation2 + $0x4] sm:$0xf]
    %v70 = vld [vmem:[#allocation5] sm:$0xf]
    %v71 = vld [vmem:[#allocation5 + $0x4] sm:$0xf]
    %v72 = vld [vmem:[#allocation5 + $0x8] sm:$0xf]
    %v73 = vld [vmem:[#allocation5 + $0xc] sm:$0xf]
    %v74 = vld [vmem:[#allocation5 + $0x10] sm:$0xf]
    %v75 = vld [vmem:[#allocation5 + $0x14] sm:$0xf]
    %v76 = vld [vmem:[#allocation5 + $0x18] sm:$0xf]
    %v77 = vld [vmem:[#allocation5 + $0x1c] sm:$0xf]
    %v78 = vld [vmem:[#allocation5 + $0x20] sm:$0xf]
    %v79 = vld [vmem:[#allocation5 + $0x24] sm:$0xf]
    %v80 = vld [vmem:[#allocation5 + $0x28] sm:$0xf]
    %v81 = vld [vmem:[#allocation5 + $0x2c] sm:$0xf]
    %v82 = vld [vmem:[#allocation5 + $0x30] sm:$0xf]
    %v83 = vld [vmem:[#allocation5 + $0x34] sm:$0xf]
    %v84 = vld [vmem:[#allocation5 + $0x38] sm:$0xf]
    %v85 = vld [vmem:[#allocation5 + $0x3c] sm:$0xf]
    %v86 = vld [vmem:[%s2] sm:$0x1]
    %v88 = vperm.slane %v86, 0
    %v92 = vunpack.c.l.b16 %v68
    %v93 = vunpack.c.l.b16 %v69
    %v94 = vpack.c.b16 %v93, %v92
    %v112 = vunpack.c.l.b16 %v70
    %v113 = vunpack.c.l.b16 %v71
    %v114 = vunpack.c.l.b16 %v72
    %v115 = vunpack.c.l.b16 %v73
    %v116 = vunpack.c.l.b16 %v74
    %v117 = vunpack.c.l.b16 %v75
    %v118 = vunpack.c.l.b16 %v76
    %v119 = vunpack.c.l.b16 %v77
    %v120 = vunpack.c.l.b16 %v78
    %v121 = vunpack.c.l.b16 %v79
    %v122 = vunpack.c.l.b16 %v80
    %v123 = vunpack.c.l.b16 %v81
    %v124 = vunpack.c.l.b16 %v82
    %v125 = vunpack.c.l.b16 %v83
    %v126 = vunpack.c.l.b16 %v84
    %v127 = vunpack.c.l.b16 %v85
    %v128 = vpack.c.b16 %v113, %v112
    %v129 = vpack.c.b16 %v115, %v114
    %v130 = vpack.c.b16 %v117, %v116
    %v131 = vpack.c.b16 %v119, %v118
    %v132 = vpack.c.b16 %v121, %v120
    %v133 = vpack.c.b16 %v123, %v122
    %v134 = vpack.c.b16 %v125, %v124
    %v135 = vpack.c.b16 %v127, %v126
    %144 = vmatpush.bf16.msra.mxu0 %v135
    %145 = vmatpush.bf16.msra.mxu0 %v134
    %146 = vmatpush.bf16.msra.mxu0 %v133
    %147 = vmatpush.bf16.msra.mxu0 %v132
    %148 = vmatpush.bf16.msra.mxu0 %v131
    %149 = vmatpush.bf16.msra.mxu0 %v130
    %150 = vmatpush.bf16.msra.mxu0 %v129
    %151 = vmatpush.bf16.msra.mxu0 %v128
    %152 = vmatmul.bf16.gmra.mxu0 %v94
    %v153 = vpop.f32.mrf.mxu0
    %v154 = vadd.f32 %v88, %v153
    %v155 = vpop.f32.mrf.mxu0
    %v156 = vadd.f32 %v88, %v155
    %157 = vdwg.mxu0
    %v158 = vmax.f32 %v154, 0.0
    %v159 = vmax.f32 %v156, 0.0
    %v160 = vpack.c.bf16 %v159, %v158
    %v161 = vld [vmem:[#allocation7] sm:$0xf]
    %v162 = vld [vmem:[#allocation7 + $0x4] sm:$0xf]
    %v163 = vld [vmem:[#allocation7 + $0x8] sm:$0xf]
    %v164 = vld [vmem:[#allocation7 + $0xc] sm:$0xf]
    %v165 = vld [vmem:[#allocation7 + $0x10] sm:$0xf]
    %v166 = vld [vmem:[#allocation7 + $0x14] sm:$0xf]
    %v167 = vld [vmem:[#allocation7 + $0x18] sm:$0xf]
    %v168 = vld [vmem:[#allocation7 + $0x1c] sm:$0xf]
    %v169 = vld [vmem:[#allocation7 + $0x20] sm:$0xf]
    %v170 = vld [vmem:[#allocation7 + $0x24] sm:$0xf]
    %v171 = vld [vmem:[#allocation7 + $0x28] sm:$0xf]
    %v172 = vld [vmem:[#allocation7 + $0x2c] sm:$0xf]
    %v173 = vld [vmem:[#allocation7 + $0x30] sm:$0xf]
    %v174 = vld [vmem:[#allocation7 + $0x34] sm:$0xf]
    %v175 = vld [vmem:[#allocation7 + $0x38] sm:$0xf]
    %v176 = vld [vmem:[#allocation7 + $0x3c] sm:$0xf]
    %v177 = vld [vmem:[%s4] sm:$0x1]
    %v179 = vperm.slane %v177, 0
    %v197 = vunpack.c.l.b16 %v161
    %v198 = vunpack.c.l.b16 %v162
    %v199 = vunpack.c.l.b16 %v163
    %v200 = vunpack.c.l.b16 %v164
    %v201 = vunpack.c.l.b16 %v165
    %v202 = vunpack.c.l.b16 %v166
    %v203 = vunpack.c.l.b16 %v167
    %v204 = vunpack.c.l.b16 %v168
    %v205 = vunpack.c.l.b16 %v169
    %v206 = vunpack.c.l.b16 %v170
    %v207 = vunpack.c.l.b16 %v171
    %v208 = vunpack.c.l.b16 %v172
    %v209 = vunpack.c.l.b16 %v173
    %v210 = vunpack.c.l.b16 %v174
    %v211 = vunpack.c.l.b16 %v175
    %v212 = vunpack.c.l.b16 %v176
    %v213 = vpack.c.b16 %v198, %v197
    %v214 = vpack.c.b16 %v200, %v199
    %v215 = vpack.c.b16 %v202, %v201
    %v216 = vpack.c.b16 %v204, %v203
    %v217 = vpack.c.b16 %v206, %v205
    %v218 = vpack.c.b16 %v208, %v207
    %v219 = vpack.c.b16 %v210, %v209
    %v220 = vpack.c.b16 %v212, %v211
    %229 = vmatpush.bf16.msra.mxu0 %v220
    %230 = vmatpush.bf16.msra.mxu0 %v219
    %231 = vmatpush.bf16.msra.mxu0 %v218
    %232 = vmatpush.bf16.msra.mxu0 %v217
    %233 = vmatpush.bf16.msra.mxu0 %v216
    %234 = vmatpush.bf16.msra.mxu0 %v215
    %235 = vmatpush.bf16.msra.mxu0 %v214
    %236 = vmatpush.bf16.msra.mxu0 %v213
    %237 = vmatmul.bf16.gmra.mxu0 %v160
    %v238 = vpop.f32.mrf.mxu0
    %v239 = vadd.f32 %v179, %v238
    %v240 = vpop.f32.mrf.mxu0
    %v241 = vadd.f32 %v179, %v240
    %242 = vdwg.mxu0
    %243 = vst [vmem:[#allocation8] sm:$0xff] %v239
    %244 = vst [vmem:[#allocation8 + $0x8] sm:$0xff] %v241
    // Predicated region
    $region34: #{tpu_custom_call.1} parent=1 // pred_check
      _
    $region35: #{tpu_custom_call.1} parent=1 // pred_check_branch
      %246 = sbr.rel (0) target = $region37
    $region36: #{tpu_custom_call.1} parent=1 // pred_region
      %248 = vsyncadd [#allocation4], 0
      %s249 = sshll.u32 [#allocation8], 4
      %s250 = int_to_ptr.vmem [resolvable:$true] %s249
      %s251 = sshll.u32 %s5, 4
      %s252 = int_to_ptr.hbm [resolvable:$true] %s251
      %257 = dma.vmem_to_hbm [thread:$0]  %s250, 256, %s252, [#allocation4], 128, 128, 8
    $region37: #{tpu_custom_call.1} parent=1 // pred_fallthru
      _
    // Predicated region
    $region38: #{tpu_custom_call.1} parent=1 // pred_check
      _
    $region39: #{tpu_custom_call.1} parent=1 // pred_check_branch
      %259 = sbr.rel (0) target = $region41
    $region40: #{tpu_custom_call.1} parent=1 // pred_region
      %261 = dma.done [#allocation4], 256
    $region41: #{tpu_custom_call.1} parent=1 // pred_fallthru
      _
    %262 = vsyncpa [#allocation3], 1
    %263 = vsyncpa [#allocation6], 1
    %264 = vsyncpa [#allocation4], 1

// kernel: tpu_custom_call.1
$region0: #{tpu_custom_call.1}
  #allocation0 [shape = 'u32[]', space=smem, size = 0x4, offset = 0x4, fixed_abs, tag = 'smem constant byte address 0x4 - core index']
  #allocation1 [shape = 'u32[72,128]{1,0:T(1,128)}', space=vmem, size = 0x9000, scoped, tag = 'internal scratch']
  %s0 = inlined_call_operand.hbm [shape: bf16[16,128], index: 0, kind: input, shape index: {}]
  %s1 = inlined_call_operand.hbm [shape: bf16[128,128], index: 1, kind: input, shape index: {}]
  %s2 = inlined_call_operand.vmem [shape: f32[1,128], index: 2, kind: input, shape index: {}]
  %s3 = inlined_call_operand.hbm [shape: bf16[128,128], index: 3, kind: input, shape index: {}]
  %s4 = inlined_call_operand.vmem [shape: f32[1,128], index: 4, kind: input, shape index: {}]
  %s5 = inlined_call_operand.hbm [shape: f32[16,128], index: 5, kind: output, shape index: {}]
  %s6 = sld [smem:[#allocation0]]
  $region42: #{tpu_custom_call.1} parent=0
    _
  %s8 = ssub.s32 1, %s6
  %s9 = scalar_select 0, %s8, %s6
  $region1: #{tpu_custom_call.1} parent=0
    #allocation2 [shape = 'u8[4096]{0}', space=vmem, size = 0x1000, scoped, tag = 'input window, operand 0, single buffered']
    #allocation3 [shape = 's32[1]{0}', space=sflag, size = 0x4, scoped, tag = 'scoped memory for tpu_custom_call.1']
    #allocation4 [shape = 's32[1]{0}', space=sflag, size = 0x4, scoped, tag = 'scoped memory for tpu_custom_call.1']
    #allocation5 [shape = 'u8[32768]{0}', space=vmem, size = 0x8000, scoped, tag = 'input window, operand 1, single buffered']
    #allocation6 [shape = 's32[1]{0}', space=sflag, size = 0x4, scoped, tag = 'scoped memory for tpu_custom_call.1']
    #allocation7 [shape = 'u8[32768]{0}', space=vmem, size = 0x8000, scoped, tag = 'input window, operand 3, single buffered']
    #allocation8 [shape = 'u8[8192]{0}', space=vmem, size = 0x2000, scoped, tag = 'output window, operand 0, single buffered']
    %10 = vsyncpa [#allocation3], 0
    %11 = vsyncpa [#allocation6], 0
    %12 = vsyncpa [#allocation4], 0
    // Predicated region
    $region2: #{tpu_custom_call.1} parent=1 // pred_check
      _
    $region3: #{tpu_custom_call.1} parent=1 // pred_check_branch
      %14 = sbr.rel (0) target = $region5
    $region4: #{tpu_custom_call.1} parent=1 // pred_region
      %16 = vsyncadd [#allocation3], 0
      %s17 = sshll.u32 %s0, 4
      %s18 = int_to_ptr.hbm [resolvable:$true] %s17
      %s19 = sshll.u32 [#allocation2], 4
      %s20 = int_to_ptr.vmem [resolvable:$true] %s19
      %25 = dma.hbm_to_vmem [thread:$0]  %s18, 128, %s20, [#allocation3], 64, 64, 4
    $region5: #{tpu_custom_call.1} parent=1 // pred_fallthru
      _
    // Predicated region
    $region6: #{tpu_custom_call.1} parent=1 // pred_check
      _
    $region7: #{tpu_custom_call.1} parent=1 // pred_check_branch
      %27 = sbr.rel (0) target = $region9
    $region8: #{tpu_custom_call.1} parent=1 // pred_region
      %29 = vsyncadd [#allocation6], 0
      %s30 = sshll.u32 %s1, 4
      %s31 = int_to_ptr.hbm [resolvable:$true] %s30
      %s32 = sshll.u32 [#allocation5], 4
      %s33 = int_to_ptr.vmem [resolvable:$true] %s32
      %38 = dma.hbm_to_vmem [thread:$0]  %s31, 1024, %s33, [#allocation6], 64, 64, 4
    $region9: #{tpu_custom_call.1} parent=1 // pred_fallthru
      _
    // Predicated region
    $region10: #{tpu_custom_call.1} parent=1 // pred_check
      _
    $region11: #{tpu_custom_call.1} parent=1 // pred_check_branch
      %40 = sbr.rel (0) target = $region13
    $region12: #{tpu_custom_call.1} parent=1 // pred_region
      _
    $region13: #{tpu_custom_call.1} parent=1 // pred_fallthru
      _
    // Predicated region
    $region14: #{tpu_custom_call.1} parent=1 // pred_check
      _
    $region15: #{tpu_custom_call.1} parent=1 // pred_check_branch
      %42 = sbr.rel (0) target = $region17
    $region16: #{tpu_custom_call.1} parent=1 // pred_region
      %44 = vsyncadd [#allocation6], 0
      %s45 = sshll.u32 %s3, 4
      %s46 = int_to_ptr.hbm [resolvable:$true] %s45
      %s47 = sshll.u32 [#allocation7], 4
      %s48 = int_to_ptr.vmem [resolvable:$true] %s47
      %53 = dma.hbm_to_vmem [thread:$0]  %s46, 1024, %s48, [#allocation6], 64, 64, 4
    $region17: #{tpu_custom_call.1} parent=1 // pred_fallthru
      _
    // Predicated region
    $region18: #{tpu_custom_call.1} parent=1 // pred_check
      _
    $region19: #{tpu_custom_call.1} parent=1 // pred_check_branch
      %55 = sbr.rel (0) target = $region21
    $region20: #{tpu_custom_call.1} parent=1 // pred_region
      _
    $region21: #{tpu_custom_call.1} parent=1 // pred_fallthru
      _
    // Predicated region
    $region22: #{tpu_custom_call.1} parent=1 // pred_check
      _
    $region23: #{tpu_custom_call.1} parent=1 // pred_check_branch
      %57 = sbr.rel (0) target = $region25
    $region24: #{tpu_custom_call.1} parent=1 // pred_region
      %59 = dma.done [#allocation3], 128
    $region25: #{tpu_custom_call.1} parent=1 // pred_fallthru
      _
    // Predicated region
    $region26: #{tpu_custom_call.1} parent=1 // pred_check
      _
    $region27: #{tpu_custom_call.1} parent=1 // pred_check_branch
      %61 = sbr.rel (0) target = $region29
    $region28: #{tpu_custom_call.1} parent=1 // pred_region
      %63 = dma.done [#allocation6], 1024
    $region29: #{tpu_custom_call.1} parent=1 // pred_fallthru
      _
    // Predicated region
    $region30: #{tpu_custom_call.1} parent=1 // pred_check
      _
    $region31: #{tpu_custom_call.1} parent=1 // pred_check_branch
      %65 = sbr.rel (0) target = $region33
    $region32: #{tpu_custom_call.1} parent=1 // pred_region
      %67 = dma.done [#allocation6], 1024
    $region33: #{tpu_custom_call.1} parent=1 // pred_fallthru
      _
    %v68 = vld [vmem:[#allocation2] sm:$0xf]
    %v69 = vld [vmem:[#allocation2 + $0x4] sm:$0xf]
    %v70 = vld [vmem:[#allocation5] sm:$0xf]
    %v71 = vld [vmem:[#allocation5 + $0x4] sm:$0xf]
    %v72 = vld [vmem:[#allocation5 + $0x8] sm:$0xf]
    %v73 = vld [vmem:[#allocation5 + $0xc] sm:$0xf]
    %v74 = vld [vmem:[#allocation5 + $0x10] sm:$0xf]
    %v75 = vld [vmem:[#allocation5 + $0x14] sm:$0xf]
    %v76 = vld [vmem:[#allocation5 + $0x18] sm:$0xf]
    %v77 = vld [vmem:[#allocation5 + $0x1c] sm:$0xf]
    %v78 = vld [vmem:[#allocation5 + $0x20] sm:$0xf]
    %v79 = vld [vmem:[#allocation5 + $0x24] sm:$0xf]
    %v80 = vld [vmem:[#allocation5 + $0x28] sm:$0xf]
    %v81 = vld [vmem:[#allocation5 + $0x2c] sm:$0xf]
    %v82 = vld [vmem:[#allocation5 + $0x30] sm:$0xf]
    %v83 = vld [vmem:[#allocation5 + $0x34] sm:$0xf]
    %v84 = vld [vmem:[#allocation5 + $0x38] sm:$0xf]
    %v85 = vld [vmem:[#allocation5 + $0x3c] sm:$0xf]
    %v86 = vld [vmem:[%s2] sm:$0x1]
    %v88 = vperm.slane %v86, 0
    %v92 = vunpack.c.l.b16 %v68
    %v93 = vunpack.c.l.b16 %v69
    %v94 = vpack.c.b16 %v93, %v92
    %v112 = vunpack.c.l.b16 %v70
    %v113 = vunpack.c.l.b16 %v71
    %v114 = vunpack.c.l.b16 %v72
    %v115 = vunpack.c.l.b16 %v73
    %v116 = vunpack.c.l.b16 %v74
    %v117 = vunpack.c.l.b16 %v75
    %v118 = vunpack.c.l.b16 %v76
    %v119 = vunpack.c.l.b16 %v77
    %v120 = vunpack.c.l.b16 %v78
    %v121 = vunpack.c.l.b16 %v79
    %v122 = vunpack.c.l.b16 %v80
    %v123 = vunpack.c.l.b16 %v81
    %v124 = vunpack.c.l.b16 %v82
    %v125 = vunpack.c.l.b16 %v83
    %v126 = vunpack.c.l.b16 %v84
    %v127 = vunpack.c.l.b16 %v85
    %v128 = vpack.c.b16 %v113, %v112
    %v129 = vpack.c.b16 %v115, %v114
    %v130 = vpack.c.b16 %v117, %v116
    %v131 = vpack.c.b16 %v119, %v118
    %v132 = vpack.c.b16 %v121, %v120
    %v133 = vpack.c.b16 %v123, %v122
    %v134 = vpack.c.b16 %v125, %v124
    %v135 = vpack.c.b16 %v127, %v126
    %144 = vmatpush.bf16.msra.mxu0 %v135
    %145 = vmatpush.bf16.msra.mxu0 %v134
    %146 = vmatpush.bf16.msra.mxu0 %v133
    %147 = vmatpush.bf16.msra.mxu0 %v132
    %148 = vmatpush.bf16.msra.mxu0 %v131
    %149 = vmatpush.bf16.msra.mxu0 %v130
    %150 = vmatpush.bf16.msra.mxu0 %v129
    %151 = vmatpush.bf16.msra.mxu0 %v128
    %152 = vmatmul.bf16.gmra.mxu0 %v94
    %v153 = vpop.f32.mrf.mxu0
    %v154 = vadd.f32 %v88, %v153
    %v155 = vpop.f32.mrf.mxu0
    %v156 = vadd.f32 %v88, %v155
    %157 = vdwg.mxu0
    %v158 = vmax.f32 %v154, 0.0
    %v159 = vmax.f32 %v156, 0.0
    %v160 = vpack.c.bf16 %v159, %v158
    %v161 = vld [vmem:[#allocation7] sm:$0xf]
    %v162 = vld [vmem:[#allocation7 + $0x4] sm:$0xf]
    %v163 = vld [vmem:[#allocation7 + $0x8] sm:$0xf]
    %v164 = vld [vmem:[#allocation7 + $0xc] sm:$0xf]
    %v165 = vld [vmem:[#allocation7 + $0x10] sm:$0xf]
    %v166 = vld [vmem:[#allocation7 + $0x14] sm:$0xf]
    %v167 = vld [vmem:[#allocation7 + $0x18] sm:$0xf]
    %v168 = vld [vmem:[#allocation7 + $0x1c] sm:$0xf]
    %v169 = vld [vmem:[#allocation7 + $0x20] sm:$0xf]
    %v170 = vld [vmem:[#allocation7 + $0x24] sm:$0xf]
    %v171 = vld [vmem:[#allocation7 + $0x28] sm:$0xf]
    %v172 = vld [vmem:[#allocation7 + $0x2c] sm:$0xf]
    %v173 = vld [vmem:[#allocation7 + $0x30] sm:$0xf]
    %v174 = vld [vmem:[#allocation7 + $0x34] sm:$0xf]
    %v175 = vld [vmem:[#allocation7 + $0x38] sm:$0xf]
    %v176 = vld [vmem:[#allocation7 + $0x3c] sm:$0xf]
    %v177 = vld [vmem:[%s4] sm:$0x1]
    %v179 = vperm.slane %v177, 0
    %v197 = vunpack.c.l.b16 %v161
    %v198 = vunpack.c.l.b16 %v162
    %v199 = vunpack.c.l.b16 %v163
    %v200 = vunpack.c.l.b16 %v164
    %v201 = vunpack.c.l.b16 %v165
    %v202 = vunpack.c.l.b16 %v166
    %v203 = vunpack.c.l.b16 %v167
    %v204 = vunpack.c.l.b16 %v168
    %v205 = vunpack.c.l.b16 %v169
    %v206 = vunpack.c.l.b16 %v170
    %v207 = vunpack.c.l.b16 %v171
    %v208 = vunpack.c.l.b16 %v172
    %v209 = vunpack.c.l.b16 %v173
    %v210 = vunpack.c.l.b16 %v174
    %v211 = vunpack.c.l.b16 %v175
    %v212 = vunpack.c.l.b16 %v176
    %v213 = vpack.c.b16 %v198, %v197
    %v214 = vpack.c.b16 %v200, %v199
    %v215 = vpack.c.b16 %v202, %v201
    %v216 = vpack.c.b16 %v204, %v203
    %v217 = vpack.c.b16 %v206, %v205
    %v218 = vpack.c.b16 %v208, %v207
    %v219 = vpack.c.b16 %v210, %v209
    %v220 = vpack.c.b16 %v212, %v211
    %229 = vmatpush.bf16.msra.mxu0 %v220
    %230 = vmatpush.bf16.msra.mxu0 %v219
    %231 = vmatpush.bf16.msra.mxu0 %v218
    %232 = vmatpush.bf16.msra.mxu0 %v217
    %233 = vmatpush.bf16.msra.mxu0 %v216
    %234 = vmatpush.bf16.msra.mxu0 %v215
    %235 = vmatpush.bf16.msra.mxu0 %v214
    %236 = vmatpush.bf16.msra.mxu0 %v213
    %237 = vmatmul.bf16.gmra.mxu0 %v160
    %v238 = vpop.f32.mrf.mxu0
    %v239 = vadd.f32 %v179, %v238
    %v240 = vpop.f32.mrf.mxu0
    %v241 = vadd.f32 %v179, %v240
    %242 = vdwg.mxu0
    %243 = vst [vmem:[#allocation8] sm:$0xff] %v239
    %244 = vst [vmem:[#allocation8 + $0x8] sm:$0xff] %v241
    // Predicated region
    $region34: #{tpu_custom_call.1} parent=1 // pred_check
      _
    $region35: #{tpu_custom_call.1} parent=1 // pred_check_branch
      %246 = sbr.rel (0) target = $region37
    $region36: #{tpu_custom_call.1} parent=1 // pred_region
      %248 = vsyncadd [#allocation4], 0
      %s249 = sshll.u32 [#allocation8], 4
      %s250 = int_to_ptr.vmem [resolvable:$true] %s249
      %s251 = sshll.u32 %s5, 4
      %s252 = int_to_ptr.hbm [resolvable:$true] %s251
      %257 = dma.vmem_to_hbm [thread:$0]  %s250, 256, %s252, [#allocation4], 128, 128, 8
    $region37: #{tpu_custom_call.1} parent=1 // pred_fallthru
      _
    // Predicated region
    $region38: #{tpu_custom_call.1} parent=1 // pred_check
      _
    $region39: #{tpu_custom_call.1} parent=1 // pred_check_branch
      %259 = sbr.rel (0) target = $region41
    $region40: #{tpu_custom_call.1} parent=1 // pred_region
      %261 = dma.done [#allocation4], 256
    $region41: #{tpu_custom_call.1} parent=1 // pred_fallthru
      _
    %262 = vsyncpa [#allocation3], 1
    %263 = vsyncpa [#allocation6], 1
    %264 = vsyncpa [#allocation4], 1

</llo_original>
